<compile_context>
chip_gen: v7x
topology: tpu7x:2x2x1
jax: 0.10.0
libtpu: 0.0.40
codegen_flags: <defaults>
</compile_context>

<pallas_src>
from functools import partial

import jax
import jax.numpy as jnp
from jax.experimental import pallas as pl
from jax.experimental.pallas import tpu as pltpu


def _round_up(x, m):
    return (x + m - 1) // m * m


# ---------------------------------------------------------------------------
# Pallas kernel: out_tile = normalize(path_tile @ X_tile), reduction over K
# ---------------------------------------------------------------------------
def _msg_agg_kernel(path_ref, x_ref, o_ref, acc_ref, rsum_ref, *, mean_agg):
    k = pl.program_id(2)

    @pl.when(k == 0)
    def _init():
        acc_ref[...] = jnp.zeros_like(acc_ref)
        if mean_agg:
            rsum_ref[...] = jnp.zeros_like(rsum_ref)

    p = path_ref[0]          # (TM, TK)
    x = x_ref[0]             # (TK, Dp)
    acc_ref[...] += jnp.dot(p, x, preferred_element_type=jnp.float32)
    if mean_agg:
        rsum_ref[...] += jnp.sum(p.astype(jnp.float32), axis=-1, keepdims=True)

    @pl.when(k == pl.num_programs(2) - 1)
    def _finalize():
        out = acc_ref[...]
        if mean_agg:
            s = rsum_ref[...]
            # torch: norm = 1 / sum ; norm[isinf(norm)] = 0
            inv = jnp.where(s != 0.0, 1.0 / s, 0.0)
            out = out * inv
        o_ref[...] = out[None].astype(o_ref.dtype)


# ---------------------------------------------------------------------------
# Wrapper: padding + tiling + pallas_call
# ---------------------------------------------------------------------------
def message_agg(X, path, agg_method="mean", *, tm=256, tk=512):
    # Accept the broadcasting cases torch.matmul allows.
    if path.ndim == 2 and X.ndim == 2:
        return message_agg(X[None], path[None], agg_method, tm=tm, tk=tk)[0]
    if X.ndim == 2 and path.ndim == 3:
        X = jnp.broadcast_to(X[None], (path.shape[0],) + X.shape)

    B, M, K = path.shape
    Bx, Kx, D = X.shape
    assert B == Bx and K == Kx, "path / X shape mismatch"

    TM = min(tm, _round_up(M, 8))       # sublane-aligned row tile
    TK = min(tk, _round_up(K, 128))     # lane-aligned reduction tile
    Mp = _round_up(M, TM)
    Kp = _round_up(K, TK)
    Dp = _round_up(D, 128)              # lane-dense output

    path_p = path
    if (Mp, Kp) != (M, K):
        path_p = jnp.pad(path, ((0, 0), (0, Mp - M), (0, Kp - K)))
    X_p = X
    if (Kp, Dp) != (K, D):
        X_p = jnp.pad(X, ((0, 0), (0, Kp - K), (0, Dp - D)))

    grid = (B, Mp // TM, Kp // TK)
    mean_agg = (agg_method == "mean")

    out = pl.pallas_call(
        partial(_msg_agg_kernel, mean_agg=mean_agg),
        out_shape=jax.ShapeDtypeStruct((B, Mp, Dp), X.dtype),
        grid=grid,
        in_specs=[
            pl.BlockSpec((1, TM, TK), lambda b, i, k: (b, i, k)),   # path tile
            pl.BlockSpec((1, TK, Dp), lambda b, i, k: (b, k, 0)),   # X tile
        ],
        out_specs=pl.BlockSpec((1, TM, Dp), lambda b, i, k: (b, i, 0)),
        scratch_shapes=[
            pltpu.VMEM((TM, Dp), jnp.float32),   # matmul accumulator
            pltpu.VMEM((TM, 1), jnp.float32),    # path row-sum accumulator
        ],
        compiler_params=pltpu.CompilerParams(
            dimension_semantics=("parallel", "parallel", "arbitrary")),
    )(path_p, X_p)

    return out[:, :M, :D]


# ---------------------------------------------------------------------------
# Pure-JAX reference (mirrors the PyTorch module)
# ---------------------------------------------------------------------------
def message_agg_reference(X, path, agg_method="mean"):
    out = jnp.matmul(path, X, precision=jax.lax.Precision.HIGHEST)
    if agg_method == "mean":
        s = jnp.sum(path, axis=2, keepdims=True)
        inv = jnp.where(s != 0.0, 1.0 / s, 0.0)   # 1/sum with inf -> 0
        out = inv * out
    return out


if __name__ == "__main__":
    key = jax.random.PRNGKey(0)
    kx, kp = jax.random.split(key)

    B, n_tgt, n_src, dim = 2, 72, 200, 48          # small, non-aligned on purpose
    X = jax.random.normal(kx, (B, n_src, dim), jnp.float32)
    path = jax.random.bernoulli(kp, 0.3, (B, n_tgt, n_src)).astype(jnp.float32)
    path = path.at[:, :3, :].set(0.0)              # isolated targets -> exercises inf->0 path

    # small tiles so the test exercises both the M tiling and the K reduction loop
    fwd_mean = jax.jit(partial(message_agg, agg_method="mean", tm=64, tk=128))
    fwd_sum = jax.jit(partial(message_agg, agg_method="sum", tm=64, tk=128))

    y_mean = fwd_mean(X, path)
    y_sum = fwd_sum(X, path)
    jax.block_until_ready((y_mean, y_sum))

    ref_mean = message_agg_reference(X, path, "mean")
    ref_sum = message_agg_reference(X, path, "sum")

    assert y_mean.shape == (B, n_tgt, dim) and y_mean.dtype == jnp.float32
    assert y_sum.shape == (B, n_tgt, dim)
    assert jnp.allclose(y_mean, ref_mean, rtol=1e-2, atol=1e-2)
    assert jnp.allclose(y_sum, ref_sum, rtol=1e-2, atol=1e-2)
    print("KERNEL_OK")
</pallas_src>

<mosaic_0001>
module attributes {stable_mosaic.version = 11 : i64} {
  func.func @_msg_agg_kernel(%arg0: i32, %arg1: i32, %arg2: i32, %arg3: memref<1x64x128xf32, #tpu.memory_space<vmem>>, %arg4: memref<1x128x128xf32, #tpu.memory_space<vmem>>, %arg5: memref<1x64x128xf32, #tpu.memory_space<vmem>>, %arg6: memref<64x128xf32, #tpu.memory_space<vmem>>, %arg7: memref<64x1xf32, #tpu.memory_space<vmem>>) attributes {dimension_semantics = [#tpu.dimension_semantics<parallel>, #tpu.dimension_semantics<parallel>, #tpu.dimension_semantics<arbitrary>], iteration_bounds = array<i64: 2, 2, 2>, scalar_prefetch = 0 : i64, scratch_operands = 2 : i64, tpu.core_type = #tpu.core_type<tc>, window_params = [{transform_indices = @transform_0, window_bounds = array<i64: 1, 64, 128>}, {transform_indices = @transform_1, window_bounds = array<i64: 1, 128, 128>}, {transform_indices = @transform_2, window_bounds = array<i64: 1, 64, 128>}]} {
    %c0_i32 = arith.constant 0 : i32
    %0 = arith.cmpi eq, %arg2, %c0_i32 : i32
    %1 = arith.extui %0 : i1 to i32
    %c0_i32_0 = arith.constant 0 : i32
    %2 = arith.cmpi ne, %1, %c0_i32_0 : i32
    scf.if %2 {
      %cst_16 = arith.constant 0.000000e+00 : f32
      %19 = vector.broadcast %cst_16 : f32 to vector<64x128xf32>
      %c0_17 = arith.constant 0 : index
      %c0_18 = arith.constant 0 : index
      %20 = vector.load %arg6[%c0_17, %c0_18] : memref<64x128xf32, #tpu.memory_space<vmem>>, vector<64x128xf32>
      tpu.vector_store %arg6[%c0_17, %c0_18], %19 {strides = array<i32>} : memref<64x128xf32, #tpu.memory_space<vmem>>, vector<64x128xf32>,
      %cst_19 = arith.constant 0.000000e+00 : f32
      %21 = vector.broadcast %cst_19 : f32 to vector<64x1xf32>
      %c0_20 = arith.constant 0 : index
      %c0_21 = arith.constant 0 : index
      %22 = vector.load %arg7[%c0_20, %c0_21] : memref<64x1xf32, #tpu.memory_space<vmem>>, vector<64x1xf32>
      tpu.vector_store %arg7[%c0_20, %c0_21], %21 {strides = array<i32>} : memref<64x1xf32, #tpu.memory_space<vmem>>, vector<64x1xf32>,
    } else {
    }
    %c0 = arith.constant 0 : index
    %c0_1 = arith.constant 0 : index
    %c0_2 = arith.constant 0 : index
    %3 = vector.load %arg3[%c0, %c0_1, %c0_2] : memref<1x64x128xf32, #tpu.memory_space<vmem>>, vector<1x64x128xf32>
    %4 = vector.shape_cast %3 : vector<1x64x128xf32> to vector<64x128xf32>
    %c0_3 = arith.constant 0 : index
    %c0_4 = arith.constant 0 : index
    %c0_5 = arith.constant 0 : index
    %5 = vector.load %arg4[%c0_3, %c0_4, %c0_5] : memref<1x128x128xf32, #tpu.memory_space<vmem>>, vector<1x128x128xf32>
    %6 = vector.shape_cast %5 : vector<1x128x128xf32> to vector<128x128xf32>
    %c0_6 = arith.constant 0 : index
    %c0_7 = arith.constant 0 : index
    %7 = vector.load %arg6[%c0_6, %c0_7] : memref<64x128xf32, #tpu.memory_space<vmem>>, vector<64x128xf32>
    %cst = arith.constant dense<0.000000e+00> : vector<64x128xf32>
    %8 = tpu.matmul %4, %6, %cst {dimension_numbers = #tpu.dot_dimension_numbers<[1], [0], [0], [1], [0, 0, 1, 1], [], []>} : vector<64x128xf32>, vector<128x128xf32>, vector<64x128xf32> -> vector<64x128xf32>
    %9 = arith.addf %7, %8 : vector<64x128xf32>
    %c0_8 = arith.constant 0 : index
    %c0_9 = arith.constant 0 : index
    %10 = vector.load %arg6[%c0_8, %c0_9] : memref<64x128xf32, #tpu.memory_space<vmem>>, vector<64x128xf32>
    tpu.vector_store %arg6[%c0_8, %c0_9], %9 {strides = array<i32>} : memref<64x128xf32, #tpu.memory_space<vmem>>, vector<64x128xf32>,
    %c0_10 = arith.constant 0 : index
    %c0_11 = arith.constant 0 : index
    %11 = vector.load %arg7[%c0_10, %c0_11] : memref<64x1xf32, #tpu.memory_space<vmem>>, vector<64x1xf32>
    %cst_12 = arith.constant dense<0.000000e+00> : vector<64xf32>
    %12 = vector.multi_reduction <add>, %4, %cst_12 [1] : vector<64x128xf32> to vector<64xf32>
    %13 = vector.shape_cast %12 : vector<64xf32> to vector<64x1xf32>
    %14 = arith.addf %11, %13 : vector<64x1xf32>
    %c0_13 = arith.constant 0 : index
    %c0_14 = arith.constant 0 : index
    %15 = vector.load %arg7[%c0_13, %c0_14] : memref<64x1xf32, #tpu.memory_space<vmem>>, vector<64x1xf32>
    tpu.vector_store %arg7[%c0_13, %c0_14], %14 {strides = array<i32>} : memref<64x1xf32, #tpu.memory_space<vmem>>, vector<64x1xf32>,
    %c1_i32 = arith.constant 1 : i32
    %16 = arith.cmpi eq, %arg2, %c1_i32 : i32
    %17 = arith.extui %16 : i1 to i32
    %c0_i32_15 = arith.constant 0 : i32
    %18 = arith.cmpi ne, %17, %c0_i32_15 : i32
    scf.if %18 {
      %c0_16 = arith.constant 0 : index
      %c0_17 = arith.constant 0 : index
      %19 = vector.load %arg6[%c0_16, %c0_17] : memref<64x128xf32, #tpu.memory_space<vmem>>, vector<64x128xf32>
      %c0_18 = arith.constant 0 : index
      %c0_19 = arith.constant 0 : index
      %20 = vector.load %arg7[%c0_18, %c0_19] : memref<64x1xf32, #tpu.memory_space<vmem>>, vector<64x1xf32>
      %cst_20 = arith.constant 0.000000e+00 : f32
      %21 = vector.broadcast %cst_20 : f32 to vector<64x1xf32>
      %22 = arith.cmpf one, %20, %21 : vector<64x1xf32>
      %cst_21 = arith.constant 1.000000e+00 : f32
      %23 = vector.broadcast %cst_21 : f32 to vector<64x1xf32>
      %24 = arith.divf %23, %20 : vector<64x1xf32>
      %cst_22 = arith.constant 0.000000e+00 : f32
      %25 = vector.broadcast %cst_22 : f32 to vector<64x1xf32>
      %26 = arith.select %22, %24, %25 : vector<64x1xi1>, vector<64x1xf32>
      %27 = vector.broadcast %26 : vector<64x1xf32> to vector<64x128xf32>
      %28 = arith.mulf %19, %27 : vector<64x128xf32>
      %29 = vector.shape_cast %28 : vector<64x128xf32> to vector<1x64x128xf32>
      %c0_23 = arith.constant 0 : index
      %c0_24 = arith.constant 0 : index
      %c0_25 = arith.constant 0 : index
      %30 = vector.load %arg5[%c0_23, %c0_24, %c0_25] : memref<1x64x128xf32, #tpu.memory_space<vmem>>, vector<1x64x128xf32>
      tpu.vector_store %arg5[%c0_23, %c0_24, %c0_25], %29 {strides = array<i32>} : memref<1x64x128xf32, #tpu.memory_space<vmem>>, vector<1x64x128xf32>,
    } else {
    }
    return
  }
  func.func @transform_0(%arg0: i32, %arg1: i32, %arg2: i32) -> (i32, i32, i32) {
    %c0_i32 = arith.constant 0 : i32
    return %arg0, %arg1, %arg2 : i32, i32, i32
  }
  func.func @transform_1(%arg0: i32, %arg1: i32, %arg2: i32) -> (i32, i32, i32) {
    %c0_i32 = arith.constant 0 : i32
    %c0_i32_0 = arith.constant 0 : i32
    return %arg0, %arg2, %c0_i32 : i32, i32, i32
  }
  func.func @transform_2(%arg0: i32, %arg1: i32, %arg2: i32) -> (i32, i32, i32) {
    %c0_i32 = arith.constant 0 : i32
    %c0_i32_0 = arith.constant 0 : i32
    return %arg0, %arg1, %c0_i32 : i32, i32, i32
  }
}

</mosaic_0001>

<llo_original>
// kernel: message_agg.1
$region0: #{message_agg.1}
  #allocation0 [shape = 'u32[]', space=smem, size = 0x4, offset = 0x4, fixed_abs, tag = 'smem constant byte address 0x4 - core index']
  #allocation1 [shape = 'u32[144,128]{1,0:T(1,128)}', space=vmem, size = 0x12000, scoped, tag = 'internal scratch']
  #allocation2 [shape = 'f32[64,128]{1,0:T(8,128)}', space=vmem, size = 0x8000, scoped, tag = 'scratch operand']
  #allocation3 [shape = 'f32[64,1]{1,0:T(8,128)}', space=vmem, size = 0x8000, scoped, tag = 'scratch operand']
  %s0 = inlined_call_operand.vmem [shape: f32[2,128,256], index: 0, kind: input, shape index: {}]
  %s1 = inlined_call_operand.vmem [shape: f32[2,256,128], index: 1, kind: input, shape index: {}]
  %s2 = inlined_call_operand.vmem [shape: f32[2,128,128], index: 2, kind: output, shape index: {}]
  %s3 = sld [smem:[#allocation0]]
  $region87: #{message_agg.1} parent=0
    _
  %s5 = ssub.s32 1, %s3
  %s6 = scalar_select 0, %s5, %s3
  $region1: #{message_agg.1} parent=0
    #allocation4 [shape = 'u8[65536]{0}', space=vmem, size = 0x10000, scoped, tag = 'input window, operand 0']
    loop: start=0, step=1, limit=10
    $region2: #{message_agg.1} parent=1 // loop_pre_header
      _
    $region3: #{message_agg.1} parent=1 // loop_header
      %s8 = sphi 0, %s12
      %p9 = scmp.ge.s32.totalorder %s8, 10
      %s15 = sphi 0, %s34
      %s16 = sphi 0, %s30
      %s17 = sphi 0, %s26
      %s18 = sphi 0, %s15
      %s19 = sphi 0, %s16
      %s20 = sphi 0, %s17
      %s21 = sphi 0, %s18
      %s22 = sphi 0, %s19
      %s23 = sphi 0, %s20
      %s41 = sphi 0, %s43
      %s44 = sphi 0, %s41
      %s45 = sphi 0, %s44
      %s61 = sphi 0, %s45
      %s69 = sphi 0, %s71
      %s72 = sphi 0, %s69
      %s73 = sphi 0, %s72
      %s89 = sphi 0, %s73
      %s97 = sphi 0, %s99
      %s100 = sphi 0, %s97
      %s101 = sphi 0, %s100
      %s117 = sphi 0, %s101
    $region4: #{message_agg.1} parent=1 // loop_header_branch
      %11 = sbr.rel (%p9) target = $region8
    $region5: #{message_agg.1} parent=1 // loop_body
      %s13 = ssub.s32 %s8, 1
      %s14 = ssub.s32 %s8, 2
      %s24 = sadd.s32 1, %s17
      %p25 = scmp.ge.s32.totalorder %s24, 2
      %s26 = scalar_select %p25, 0, %s24
      %s27 = sadd.s32 1, %s16
      %s28 = scalar_select %p25, %s27, %s16
      %p29 = scmp.ge.s32.totalorder %s28, 2
      %s30 = scalar_select %p29, 0, %s28
      %s31 = sadd.s32 1, %s15
      %s32 = scalar_select %p29, %s31, %s15
      %p33 = scmp.ge.s32.totalorder %s32, 2
      %s34 = scalar_select %p33, 0, %s32
      %s35 = ssub.s32 %s15, %s34
      %s36 = ssub.s32 %s16, %s30
      %s37 = sor.u32 %s35, %s36
      %s38 = ssub.s32 %s17, %s26
      %s39 = sor.u32 %s37, %s38
      %p40 = scmp.eq.s32.totalorder %s39, 0
      %s42 = sadd.s32 %s41, 1
      %s43 = scalar_select %p40, %s41, %s42
      %p46 = pneg %p40
      %p47 = scmp.eq.s32.totalorder %s8, 7
      %p48 = por %p46, %p47
      %p49 = scmp.ne.s32.totalorder %s41, %s44
      %p50 = scmp.eq.s32.totalorder %s8, 0
      %p51 = por %p49, %p50
      %p52 = scmp.ne.s32.totalorder %s41, %s44
      %p53 = scmp.eq.s32.totalorder %s13, 7
      %p54 = por %p52, %p53
      %p55 = scmp.ne.s32.totalorder %s44, %s45
      %p56 = scmp.eq.s32.totalorder %s13, 0
      %p57 = por %p55, %p56
      %p58 = scmp.ne.s32.totalorder %s44, %s45
      %p59 = scmp.eq.s32.totalorder %s14, 7
      %p60 = por %p58, %p59
      %p62 = scmp.ne.s32.totalorder %s45, %s61
      %p63 = scmp.eq.s32.totalorder %s14, 0
      %p64 = por %p62, %p63
      %s65 = ssub.s32 %s15, %s34
      %s66 = ssub.s32 %s17, %s26
      %s67 = sor.u32 %s65, %s66
      %p68 = scmp.eq.s32.totalorder %s67, 0
      %s70 = sadd.s32 %s69, 1
      %s71 = scalar_select %p68, %s69, %s70
      %p74 = pneg %p68
      %p75 = scmp.eq.s32.totalorder %s8, 7
      %p76 = por %p74, %p75
      %p77 = scmp.ne.s32.totalorder %s69, %s72
      %p78 = scmp.eq.s32.totalorder %s8, 0
      %p79 = por %p77, %p78
      %p80 = scmp.ne.s32.totalorder %s69, %s72
      %p81 = scmp.eq.s32.totalorder %s13, 7
      %p82 = por %p80, %p81
      %p83 = scmp.ne.s32.totalorder %s72, %s73
      %p84 = scmp.eq.s32.totalorder %s13, 0
      %p85 = por %p83, %p84
      %p86 = scmp.ne.s32.totalorder %s72, %s73
      %p87 = scmp.eq.s32.totalorder %s14, 7
      %p88 = por %p86, %p87
      %p90 = scmp.ne.s32.totalorder %s73, %s89
      %p91 = scmp.eq.s32.totalorder %s14, 0
      %p92 = por %p90, %p91
      %s93 = ssub.s32 %s15, %s34
      %s94 = ssub.s32 %s16, %s30
      %s95 = sor.u32 %s93, %s94
      %p96 = scmp.eq.s32.totalorder %s95, 0
      %s98 = sadd.s32 %s97, 1
      %s99 = scalar_select %p96, %s97, %s98
      %p102 = pneg %p96
      %p103 = scmp.eq.s32.totalorder %s8, 7
      %p104 = por %p102, %p103
      %p105 = scmp.ne.s32.totalorder %s97, %s100
      %p106 = scmp.eq.s32.totalorder %s8, 0
      %p107 = por %p105, %p106
      %p108 = scmp.ne.s32.totalorder %s97, %s100
      %p109 = scmp.eq.s32.totalorder %s13, 7
      %p110 = por %p108, %p109
      %p111 = scmp.ne.s32.totalorder %s100, %s101
      %p112 = scmp.eq.s32.totalorder %s13, 0
      %p113 = por %p111, %p112
      %p114 = scmp.ne.s32.totalorder %s100, %s101
      %p115 = scmp.eq.s32.totalorder %s14, 7
      %p116 = por %p114, %p115
      %p118 = scmp.ne.s32.totalorder %s101, %s117
      %p119 = scmp.eq.s32.totalorder %s14, 0
      %p120 = por %p118, %p119
      %p121 = scmp.le.s32.totalorder 1, %s8
      %p122 = scmp.lt.s32.totalorder %s8, 9
      %p123 = pnand %p121, %p122
      %p124 = pneg %p123
      // Predicated region
      $region9: #{message_agg.1} parent=5 // pred_check
        _
      $region10: #{message_agg.1} parent=5 // pred_check_branch
        %126 = sbr.rel (%p123) target = $region12
      $region11: #{message_agg.1} parent=5 // pred_region
        %s127 = ssub.s32 %s8, 1
      $region12: #{message_agg.1} parent=5 // pred_fallthru
        _
      %p128 = scmp.lt.s32.totalorder %s8, 8
      // Predicated region
      $region13: #{message_agg.1} parent=5 // pred_check
        %p129 = pneg %p128
      $region14: #{message_agg.1} parent=5 // pred_check_branch
        %131 = sbr.rel (%p129) target = $region16
      $region15: #{message_agg.1} parent=5 // pred_region
        // Predicated region
        $region17: #{message_agg.1} parent=15 // pred_check
          %p132 = pneg %p51
        $region18: #{message_agg.1} parent=15 // pred_check_branch
          %134 = sbr.rel (%p132) target = $region20
        $region19: #{message_agg.1} parent=15 // pred_region
          %s135 = sand.u32 %s41, 1
          %s136 = sand.u32 %s41, 1
          %s137 = smul.addr %s136, 64
          %s138 = scalar_lea.vmem [#allocation4], %s137
          %s139 = smul.u32 8, %s16
          %s140 = smul.addr %s139, 2
          %s141 = sadd.s32 %s17, %s140
          %s142 = smul.addr %s15, 32
          %s143 = sadd.s32 %s141, %s142
          %s144 = smul.addr %s143, 8
          %s145 = scalar_lea.vmem %s0, %s144
          // Predicated region
          $region21: #{message_agg.1} parent=19 // pred_check
            _
          $region22: #{message_agg.1} parent=19 // pred_check_branch
            %147 = sbr.rel (0) target = $region24
          $region23: #{message_agg.1} parent=19 // pred_region
            // Predicated region
            $region25: #{message_agg.1} parent=23 // pred_check
              _
            $region26: #{message_agg.1} parent=23 // pred_check_branch
              %149 = sbr.rel (0) target = $region28
            $region27: #{message_agg.1} parent=23 // pred_region
              // Predicated region
              $region40: #{message_agg.1} parent=27 // pred_check
                _
              $region41: #{message_agg.1} parent=27 // pred_check_branch
                %178 = sbr.rel (0) target = $region43
              $region42: #{message_agg.1} parent=27 // pred_region
                loop: start=0, step=1, limit=1
                $region44: #{message_agg.1} parent=42 // loop_pre_header
                  _
                $region45: #{message_agg.1} parent=42 // loop_header
                  %s180 = sphi 0, %s184
                  %p181 = scmp.ge.s32.totalorder %s180, 1
                  %s185 = sphi %s145, %s145
                  %s186 = sphi %s138, %s138
                $region46: #{message_agg.1} parent=42 // loop_header_branch
                  %183 = sbr.rel (%p181) target = $region50
                $region47: #{message_agg.1} parent=42 // loop_body
                  %v187 = vld [vmem:[%s185] sm:$0xff]
                  %188 = vst [vmem:[%s186] sm:$0xff] %v187
                  %v189 = vld [vmem:[%s185 + $0x10] sm:$0xff]
                  %190 = vst [vmem:[%s186 + $0x8] sm:$0xff] %v189
                  %v191 = vld [vmem:[%s185 + $0x20] sm:$0xff]
                  %192 = vst [vmem:[%s186 + $0x10] sm:$0xff] %v191
                  %v193 = vld [vmem:[%s185 + $0x30] sm:$0xff]
                  %194 = vst [vmem:[%s186 + $0x18] sm:$0xff] %v193
                  %v195 = vld [vmem:[%s185 + $0x40] sm:$0xff]
                  %196 = vst [vmem:[%s186 + $0x20] sm:$0xff] %v195
                  %v197 = vld [vmem:[%s185 + $0x50] sm:$0xff]
                  %198 = vst [vmem:[%s186 + $0x28] sm:$0xff] %v197
                  %v199 = vld [vmem:[%s185 + $0x60] sm:$0xff]
                  %200 = vst [vmem:[%s186 + $0x30] sm:$0xff] %v199
                  %v201 = vld [vmem:[%s185 + $0x70] sm:$0xff]
                  %202 = vst [vmem:[%s186 + $0x38] sm:$0xff] %v201
                $region48: #{message_agg.1} parent=42 // loop_footer
                  %s184 = sadd.s32 1, %s180
                $region49: #{message_agg.1} parent=42 // loop_footer_branch
                  %179 = sbr.rel target = $region45
                $region50: #{message_agg.1} parent=42 // loop_exit
                  _
              $region43: #{message_agg.1} parent=27 // pred_fallthru
                _
              // Predicated region
              $region51: #{message_agg.1} parent=27 // pred_check
                _
              $region52: #{message_agg.1} parent=27 // pred_check_branch
                %204 = sbr.rel target = $region54
              $region53: #{message_agg.1} parent=27 // pred_region
                _
              $region54: #{message_agg.1} parent=27 // pred_fallthru
                _
            $region28: #{message_agg.1} parent=23 // pred_fallthru
              _
            // Predicated region
            $region29: #{message_agg.1} parent=23 // pred_check
              _
            $region30: #{message_agg.1} parent=23 // pred_check_branch
              %151 = sbr.rel target = $region32
            $region31: #{message_agg.1} parent=23 // pred_region
              loop: start=0, step=1, limit=1
              $region33: #{message_agg.1} parent=31 // loop_pre_header
                _
              $region34: #{message_agg.1} parent=31 // loop_header
                %s154 = sphi 0, %s158
                %p155 = scmp.ge.s32.totalorder %s154, 1
                %s159 = sphi %s145, %s145
                %s160 = sphi %s138, %s138
              $region35: #{message_agg.1} parent=31 // loop_header_branch
                %157 = sbr.rel (%p155) target = $region39
              $region36: #{message_agg.1} parent=31 // loop_body
                %v161 = vld [vmem:[%s159] sm:$0xff]
                %162 = vst [vmem:[%s160] sm:$0xff] %v161
                %v163 = vld [vmem:[%s159 + $0x10] sm:$0xff]
                %164 = vst [vmem:[%s160 + $0x8] sm:$0xff] %v163
                %v165 = vld [vmem:[%s159 + $0x20] sm:$0xff]
                %166 = vst [vmem:[%s160 + $0x10] sm:$0xff] %v165
                %v167 = vld [vmem:[%s159 + $0x30] sm:$0xff]
                %168 = vst [vmem:[%s160 + $0x18] sm:$0xff] %v167
                %v169 = vld [vmem:[%s159 + $0x40] sm:$0xff]
                %170 = vst [vmem:[%s160 + $0x20] sm:$0xff] %v169
                %v171 = vld [vmem:[%s159 + $0x50] sm:$0xff]
                %172 = vst [vmem:[%s160 + $0x28] sm:$0xff] %v171
                %v173 = vld [vmem:[%s159 + $0x60] sm:$0xff]
                %174 = vst [vmem:[%s160 + $0x30] sm:$0xff] %v173
                %v175 = vld [vmem:[%s159 + $0x70] sm:$0xff]
                %176 = vst [vmem:[%s160 + $0x38] sm:$0xff] %v175
              $region37: #{message_agg.1} parent=31 // loop_footer
                %s158 = sadd.s32 1, %s154
              $region38: #{message_agg.1} parent=31 // loop_footer_branch
                %153 = sbr.rel target = $region34
              $region39: #{message_agg.1} parent=31 // loop_exit
                _
            $region32: #{message_agg.1} parent=23 // pred_fallthru
              _
          $region24: #{message_agg.1} parent=19 // pred_fallthru
            _
          %205 = vnop
        $region20: #{message_agg.1} parent=15 // pred_fallthru
          _
        // Predicated region
        $region55: #{message_agg.1} parent=15 // pred_check
          %p206 = pneg %p79
        $region56: #{message_agg.1} parent=15 // pred_check_branch
          %208 = sbr.rel (%p206) target = $region58
        $region57: #{message_agg.1} parent=15 // pred_region
          %s209 = smul.u32 16, %s17
          %p210 = scmp.lt.s32.totalorder %s15, 1
          %s211 = scalar_select %p210, %s15, 1
          %p212 = scmp.lt.s32.totalorder %s209, 31
          %s213 = scalar_select %p212, %s209, 31
          %s214 = smul.addr %s211, 32
          %s215 = sadd.s32 %s213, %s214
          %s216 = smul.addr %s215, 8
          %s217 = scalar_lea.vmem %s1, %s216
          %s218 = smul.u32 16, %s17
        $region58: #{message_agg.1} parent=15 // pred_fallthru
          _
      $region16: #{message_agg.1} parent=5 // pred_fallthru
        _
      %p219 = scmp.le.s32.totalorder 1, %s8
      %p220 = scmp.lt.s32.totalorder %s8, 9
      %p221 = pnand %p219, %p220
      %p222 = pneg %p221
      // Predicated region
      $region59: #{message_agg.1} parent=5 // pred_check
        _
      $region60: #{message_agg.1} parent=5 // pred_check_branch
        %224 = sbr.rel (%p221) target = $region62
      $region61: #{message_agg.1} parent=5 // pred_region
        %s225 = ssub.s32 %s8, 1
        %s226 = sand.u32 %s44, 1
        %s227 = sand.u32 %s44, 1
        %s228 = smul.addr %s227, 64
        %s229 = scalar_lea.vmem [#allocation4], %s228
        // Predicated region
        $region63: #{message_agg.1} parent=61 // pred_check
          %p230 = pneg %p57
        $region64: #{message_agg.1} parent=61 // pred_check_branch
          %232 = sbr.rel (%p230) target = $region66
        $region65: #{message_agg.1} parent=61 // pred_region
          _
        $region66: #{message_agg.1} parent=61 // pred_fallthru
          _
        %s233 = sand.u32 %s44, 1
        %s234 = sand.u32 %s44, 1
        %s235 = smul.addr %s234, 64
        %s236 = scalar_lea.vmem [#allocation4], %s235
        %p237 = pneg %p57
        %p238 = pneg %p54
        %s239 = smul.u32 16, %s20
        %p240 = scmp.lt.s32.totalorder %s18, 1
        %s241 = scalar_select %p240, %s18, 1
        %p242 = scmp.lt.s32.totalorder %s239, 31
        %s243 = scalar_select %p242, %s239, 31
        %s244 = smul.addr %s241, 32
        %s245 = sadd.s32 %s243, %s244
        %s246 = smul.addr %s245, 8
        %s247 = scalar_lea.vmem %s1, %s246
        %p248 = pneg %p85
        %p249 = pneg %p82
        %p250 = pneg %p113
        %p251 = pneg %p110
        %s252 = smul.u32 8, %s19
        %p253 = scmp.lt.s32.totalorder %s18, 1
        %s254 = scalar_select %p253, %s18, 1
        %p255 = scmp.lt.s32.totalorder %s252, 15
        %s256 = scalar_select %p255, %s252, 15
        %s257 = smul.addr %s254, 16
        %s258 = sadd.s32 %s256, %s257
        %s259 = smul.addr %s258, 8
        %s260 = scalar_lea.vmem %s2, %s259
        %s261 = smul.u32 8, %s19
        %s262 = smul.u32 16, %s20
        %p263 = scmp.lt.s32.totalorder %s18, 1
        %s264 = scalar_select %p263, %s18, 1
        %p265 = scmp.lt.s32.totalorder %s262, 31
        %s266 = scalar_select %p265, %s262, 31
        %s267 = smul.addr %s264, 32
        %s268 = sadd.s32 %s266, %s267
        %s269 = smul.addr %s268, 8
        %s270 = scalar_lea.vmem %s1, %s269
        %s271 = smul.u32 16, %s20
        %s272 = smul.u32 8, %s19
        %p273 = scmp.lt.s32.totalorder %s18, 1
        %s274 = scalar_select %p273, %s18, 1
        %p275 = scmp.lt.s32.totalorder %s272, 15
        %s276 = scalar_select %p275, %s272, 15
        %s277 = smul.addr %s274, 16
        %s278 = sadd.s32 %s276, %s277
        %s279 = smul.addr %s278, 8
        %s280 = scalar_lea.vmem %s2, %s279
        %s281 = smul.u32 8, %s19
        %p282 = scmp.eq.s32.totalorder %s20, 0
        // Predicated region
        $region67: #{message_agg.1} parent=61 // pred_check
          %p283 = pneg %p282
        $region68: #{message_agg.1} parent=61 // pred_check_branch
          %285 = sbr.rel (%p283) target = $region70
        $region69: #{message_agg.1} parent=61 // pred_region
          %286 = vst [vmem:[#allocation2] sm:$0xff] 0.0
          %287 = vst [vmem:[#allocation2 + $0x8] sm:$0xff] 0.0
          %288 = vst [vmem:[#allocation2 + $0x10] sm:$0xff] 0.0
          %289 = vst [vmem:[#allocation2 + $0x18] sm:$0xff] 0.0
          %290 = vst [vmem:[#allocation2 + $0x20] sm:$0xff] 0.0
          %291 = vst [vmem:[#allocation2 + $0x28] sm:$0xff] 0.0
          %292 = vst [vmem:[#allocation2 + $0x30] sm:$0xff] 0.0
          %293 = vst [vmem:[#allocation2 + $0x38] sm:$0xff] 0.0
          %vm294 = vcmask 7168
          %295 = vst.msk [vmem:[#allocation3] sm:$0xff] %vm294, 0.0
          %296 = vst.msk [vmem:[#allocation3 + $0x8] sm:$0xff] %vm294, 0.0
          %297 = vst.msk [vmem:[#allocation3 + $0x10] sm:$0xff] %vm294, 0.0
          %298 = vst.msk [vmem:[#allocation3 + $0x18] sm:$0xff] %vm294, 0.0
          %299 = vst.msk [vmem:[#allocation3 + $0x20] sm:$0xff] %vm294, 0.0
          %300 = vst.msk [vmem:[#allocation3 + $0x28] sm:$0xff] %vm294, 0.0
          %301 = vst.msk [vmem:[#allocation3 + $0x30] sm:$0xff] %vm294, 0.0
          %302 = vst.msk [vmem:[#allocation3 + $0x38] sm:$0xff] %vm294, 0.0
        $region70: #{message_agg.1} parent=61 // pred_fallthru
          _
        %v303 = vld [vmem:[%s229] sm:$0xff]
        %v304 = vld [vmem:[%s229 + $0x8] sm:$0xff]
        %v305 = vld [vmem:[%s229 + $0x10] sm:$0xff]
        %v306 = vld [vmem:[%s229 + $0x18] sm:$0xff]
        %v307 = vld [vmem:[%s229 + $0x20] sm:$0xff]
        %v308 = vld [vmem:[%s229 + $0x28] sm:$0xff]
        %v309 = vld [vmem:[%s229 + $0x30] sm:$0xff]
        %v310 = vld [vmem:[%s229 + $0x38] sm:$0xff]
        %v311 = vld [vmem:[%s270] sm:$0xff]
        %v312 = vld [vmem:[%s270 + $0x8] sm:$0xff]
        %v313 = vld [vmem:[%s270 + $0x10] sm:$0xff]
        %v314 = vld [vmem:[%s270 + $0x18] sm:$0xff]
        %v315 = vld [vmem:[%s270 + $0x20] sm:$0xff]
        %v316 = vld [vmem:[%s270 + $0x28] sm:$0xff]
        %v317 = vld [vmem:[%s270 + $0x30] sm:$0xff]
        %v318 = vld [vmem:[%s270 + $0x38] sm:$0xff]
        %v319 = vld [vmem:[%s270 + $0x40] sm:$0xff]
        %v320 = vld [vmem:[%s270 + $0x48] sm:$0xff]
        %v321 = vld [vmem:[%s270 + $0x50] sm:$0xff]
        %v322 = vld [vmem:[%s270 + $0x58] sm:$0xff]
        %v323 = vld [vmem:[%s270 + $0x60] sm:$0xff]
        %v324 = vld [vmem:[%s270 + $0x68] sm:$0xff]
        %v325 = vld [vmem:[%s270 + $0x70] sm:$0xff]
        %v326 = vld [vmem:[%s270 + $0x78] sm:$0xff]
        %v327 = vld [vmem:[#allocation2] sm:$0xff]
        %v328 = vld [vmem:[#allocation2 + $0x8] sm:$0xff]
        %v329 = vld [vmem:[#allocation2 + $0x10] sm:$0xff]
        %v330 = vld [vmem:[#allocation2 + $0x18] sm:$0xff]
        %v331 = vld [vmem:[#allocation2 + $0x20] sm:$0xff]
        %v332 = vld [vmem:[#allocation2 + $0x28] sm:$0xff]
        %v333 = vld [vmem:[#allocation2 + $0x30] sm:$0xff]
        %v334 = vld [vmem:[#allocation2 + $0x38] sm:$0xff]
        %335 = vmatprep.subr.mxu0 0.0
        %336 = vmatpush1.msra.mxu0 %v311
        %337 = vmatprep.subr.mxu0 0.0
        %338 = vmatpush1.msra.mxu0 %v312
        %339 = vmatprep.subr.mxu0 0.0
        %340 = vmatpush1.msra.mxu0 %v313
        %341 = vmatprep.subr.mxu0 0.0
        %342 = vmatpush1.msra.mxu0 %v314
        %343 = vmatprep.subr.mxu0 0.0
        %344 = vmatpush1.msra.mxu0 %v315
        %345 = vmatprep.subr.mxu0 0.0
        %346 = vmatpush1.msra.mxu0 %v316
        %347 = vmatprep.subr.mxu0 0.0
        %348 = vmatpush1.msra.mxu0 %v317
        %349 = vmatprep.subr.mxu0 0.0
        %350 = vmatpush1.msra.mxu0 %v318
        %351 = vmatprep.subr.mxu0 0.0
        %352 = vmatpush1.msra.mxu0 %v319
        %353 = vmatprep.subr.mxu0 0.0
        %354 = vmatpush1.msra.mxu0 %v320
        %355 = vmatprep.subr.mxu0 0.0
        %356 = vmatpush1.msra.mxu0 %v321
        %357 = vmatprep.subr.mxu0 0.0
        %358 = vmatpush1.msra.mxu0 %v322
        %359 = vmatprep.subr.mxu0 0.0
        %360 = vmatpush1.msra.mxu0 %v323
        %361 = vmatprep.subr.mxu0 0.0
        %362 = vmatpush1.msra.mxu0 %v324
        %363 = vmatprep.subr.mxu0 0.0
        %364 = vmatpush1.msra.mxu0 %v325
        %365 = vmatprep.subr.mxu0 0.0
        %366 = vmatpush1.msra.mxu0 %v326
        %367 = vmatprep.subr.mxu0 0.0
        %368 = vmatpush1.msra.mxu0 0.0
        %369 = vmatprep.subr.mxu0 0.0
        %370 = vmatpush1.msra.mxu0 0.0
        %371 = vmatprep.subr.mxu0 0.0
        %372 = vmatpush1.msra.mxu0 0.0
        %373 = vmatprep.subr.mxu0 0.0
        %374 = vmatpush1.msra.mxu0 0.0
        %375 = vmatprep.subr.mxu0 0.0
        %376 = vmatpush1.msra.mxu0 0.0
        %377 = vmatprep.subr.mxu0 0.0
        %378 = vmatpush1.msra.mxu0 0.0
        %379 = vmatprep.subr.mxu0 0.0
        %380 = vmatpush1.msra.mxu0 0.0
        %381 = vmatprep.subr.mxu0 0.0
        %382 = vmatpush1.msra.mxu0 0.0
        %383 = vmatprep.subr.mxu0 0.0
        %384 = vmatpush1.msra.mxu0 0.0
        %385 = vmatprep.subr.mxu0 0.0
        %386 = vmatpush1.msra.mxu0 0.0
        %387 = vmatprep.subr.mxu0 0.0
        %388 = vmatpush1.msra.mxu0 0.0
        %389 = vmatprep.subr.mxu0 0.0
        %390 = vmatpush1.msra.mxu0 0.0
        %391 = vmatprep.subr.mxu0 0.0
        %392 = vmatpush1.msra.mxu0 0.0
        %393 = vmatprep.subr.mxu0 0.0
        %394 = vmatpush1.msra.mxu0 0.0
        %395 = vmatprep.subr.mxu0 0.0
        %396 = vmatpush1.msra.mxu0 0.0
        %397 = vmatprep.subr.mxu0 0.0
        %398 = vmatpush1.msra.mxu0 0.0
        %399 = vmatprep.mubr.f32.mxu0 0.0
        %400 = vmatmul.mubr.f32.gmra.mrb[0].mxu0 %v303
        %v401 = vpop.f32.mrb[0].mxu0
        %v402 = vadd.f32 0.0, %v401
        %v403 = vpop.f32.mrb[0].mxu0
        %404 = vmatprep.mubr.f32.mxu0 0.0
        %405 = vmatmul.mubr.f32.gmra.mrb[0].mxu0 %v304
        %v406 = vpop.f32.mrb[0].mxu0
        %v407 = vadd.f32 0.0, %v406
        %v408 = vpop.f32.mrb[0].mxu0
        %409 = vmatprep.mubr.f32.mxu0 0.0
        %410 = vmatmul.mubr.f32.gmra.mrb[0].mxu0 %v305
        %v411 = vpop.f32.mrb[0].mxu0
        %v412 = vadd.f32 0.0, %v411
        %v413 = vpop.f32.mrb[0].mxu0
        %414 = vmatprep.mubr.f32.mxu0 0.0
        %415 = vmatmul.mubr.f32.gmra.mrb[0].mxu0 %v306
        %v416 = vpop.f32.mrb[0].mxu0
        %v417 = vadd.f32 0.0, %v416
        %v418 = vpop.f32.mrb[0].mxu0
        %419 = vmatprep.mubr.f32.mxu0 0.0
        %420 = vmatmul.mubr.f32.gmra.mrb[0].mxu0 %v307
        %v421 = vpop.f32.mrb[0].mxu0
        %v422 = vadd.f32 0.0, %v421
        %v423 = vpop.f32.mrb[0].mxu0
        %424 = vmatprep.mubr.f32.mxu0 0.0
        %425 = vmatmul.mubr.f32.gmra.mrb[0].mxu0 %v308
        %v426 = vpop.f32.mrb[0].mxu0
        %v427 = vadd.f32 0.0, %v426
        %v428 = vpop.f32.mrb[0].mxu0
        %429 = vmatprep.mubr.f32.mxu0 0.0
        %430 = vmatmul.mubr.f32.gmra.mrb[0].mxu0 %v309
        %v431 = vpop.f32.mrb[0].mxu0
        %v432 = vadd.f32 0.0, %v431
        %v433 = vpop.f32.mrb[0].mxu0
        %434 = vmatprep.mubr.f32.mxu0 0.0
        %435 = vmatmul.mubr.f32.gmra.mrb[0].mxu0 %v310
        %v436 = vpop.f32.mrb[0].mxu0
        %v437 = vadd.f32 0.0, %v436
        %v438 = vpop.f32.mrb[0].mxu0
        %439 = vdwg.mxu0
        %v440 = vadd.f32 %v327, %v402
        %v441 = vadd.f32 %v328, %v407
        %v442 = vadd.f32 %v329, %v412
        %v443 = vadd.f32 %v330, %v417
        %v444 = vadd.f32 %v331, %v422
        %v445 = vadd.f32 %v332, %v427
        %v446 = vadd.f32 %v333, %v432
        %v447 = vadd.f32 %v334, %v437
        %448 = vst [vmem:[#allocation2] sm:$0xff] %v440
        %449 = vst [vmem:[#allocation2 + $0x8] sm:$0xff] %v441
        %450 = vst [vmem:[#allocation2 + $0x10] sm:$0xff] %v442
        %451 = vst [vmem:[#allocation2 + $0x18] sm:$0xff] %v443
        %452 = vst [vmem:[#allocation2 + $0x20] sm:$0xff] %v444
        %453 = vst [vmem:[#allocation2 + $0x28] sm:$0xff] %v445
        %454 = vst [vmem:[#allocation2 + $0x30] sm:$0xff] %v446
        %455 = vst [vmem:[#allocation2 + $0x38] sm:$0xff] %v447
        %v456 = vld [vmem:[#allocation3] sm:$0xff]
        %v457 = vld [vmem:[#allocation3 + $0x8] sm:$0xff]
        %v458 = vld [vmem:[#allocation3 + $0x10] sm:$0xff]
        %v459 = vld [vmem:[#allocation3 + $0x18] sm:$0xff]
        %v460 = vld [vmem:[#allocation3 + $0x20] sm:$0xff]
        %v461 = vld [vmem:[#allocation3 + $0x28] sm:$0xff]
        %v462 = vld [vmem:[#allocation3 + $0x30] sm:$0xff]
        %v463 = vld [vmem:[#allocation3 + $0x38] sm:$0xff]
        %464 = vadd.xlane.f32.xlu0 %v303
        %v465 = vpop.xlane.xlu0 %464
        %466 = vadd.xlane.f32.xlu0 %v304
        %v467 = vpop.xlane.xlu0 %466
        %468 = vadd.xlane.f32.xlu0 %v305
        %v469 = vpop.xlane.xlu0 %468
        %470 = vadd.xlane.f32.xlu0 %v306
        %v471 = vpop.xlane.xlu0 %470
        %472 = vadd.xlane.f32.xlu0 %v307
        %v473 = vpop.xlane.xlu0 %472
        %474 = vadd.xlane.f32.xlu0 %v308
        %v475 = vpop.xlane.xlu0 %474
        %476 = vadd.xlane.f32.xlu0 %v309
        %v477 = vpop.xlane.xlu0 %476
        %478 = vadd.xlane.f32.xlu0 %v310
        %v479 = vpop.xlane.xlu0 %478
        %v480 = vadd.f32 %v456, %v465
        %v481 = vadd.f32 %v457, %v467
        %v482 = vadd.f32 %v458, %v469
        %v483 = vadd.f32 %v459, %v471
        %v484 = vadd.f32 %v460, %v473
        %v485 = vadd.f32 %v461, %v475
        %v486 = vadd.f32 %v462, %v477
        %v487 = vadd.f32 %v463, %v479
        %vm488 = vcmask 7168
        %489 = vst.msk [vmem:[#allocation3] sm:$0xff] %vm488, %v480
        %490 = vst.msk [vmem:[#allocation3 + $0x8] sm:$0xff] %vm488, %v481
        %491 = vst.msk [vmem:[#allocation3 + $0x10] sm:$0xff] %vm488, %v482
        %492 = vst.msk [vmem:[#allocation3 + $0x18] sm:$0xff] %vm488, %v483
        %493 = vst.msk [vmem:[#allocation3 + $0x20] sm:$0xff] %vm488, %v484
        %494 = vst.msk [vmem:[#allocation3 + $0x28] sm:$0xff] %vm488, %v485
        %495 = vst.msk [vmem:[#allocation3 + $0x30] sm:$0xff] %vm488, %v486
        %496 = vst.msk [vmem:[#allocation3 + $0x38] sm:$0xff] %vm488, %v487
        %p497 = scmp.eq.s32.totalorder %s20, 1
        // Predicated region
        $region71: #{message_agg.1} parent=61 // pred_check
          %p498 = pneg %p497
        $region72: #{message_agg.1} parent=61 // pred_check_branch
          %500 = sbr.rel (%p498) target = $region74
        $region73: #{message_agg.1} parent=61 // pred_region
          %v501 = vld [vmem:[#allocation2] sm:$0xff]
          %v502 = vld [vmem:[#allocation2 + $0x8] sm:$0xff]
          %v503 = vld [vmem:[#allocation2 + $0x10] sm:$0xff]
          %v504 = vld [vmem:[#allocation2 + $0x18] sm:$0xff]
          %v505 = vld [vmem:[#allocation2 + $0x20] sm:$0xff]
          %v506 = vld [vmem:[#allocation2 + $0x28] sm:$0xff]
          %v507 = vld [vmem:[#allocation2 + $0x30] sm:$0xff]
          %v508 = vld [vmem:[#allocation2 + $0x38] sm:$0xff]
          %v509 = vld [vmem:[#allocation3] sm:$0xff]
          %v510 = vld [vmem:[#allocation3 + $0x8] sm:$0xff]
          %v511 = vld [vmem:[#allocation3 + $0x10] sm:$0xff]
          %v512 = vld [vmem:[#allocation3 + $0x18] sm:$0xff]
          %v513 = vld [vmem:[#allocation3 + $0x20] sm:$0xff]
          %v514 = vld [vmem:[#allocation3 + $0x28] sm:$0xff]
          %v515 = vld [vmem:[#allocation3 + $0x30] sm:$0xff]
          %v516 = vld [vmem:[#allocation3 + $0x38] sm:$0xff]
          %vm517 = vcmp.ne.f32.partialorder %v509, 0.0
          %vm518 = vcmp.ne.f32.partialorder %v510, 0.0
          %vm519 = vcmp.ne.f32.partialorder %v511, 0.0
          %vm520 = vcmp.ne.f32.partialorder %v512, 0.0
          %vm521 = vcmp.ne.f32.partialorder %v513, 0.0
          %vm522 = vcmp.ne.f32.partialorder %v514, 0.0
          %vm523 = vcmp.ne.f32.partialorder %v515, 0.0
          %vm524 = vcmp.ne.f32.partialorder %v516, 0.0
          %v525 = vrcp.pop %v509
          %v526 = vmul.f32 1.0, %v525
          %v527 = vrcp.pop %v510
          %v528 = vmul.f32 1.0, %v527
          %v529 = vrcp.pop %v511
          %v530 = vmul.f32 1.0, %v529
          %v531 = vrcp.pop %v512
          %v532 = vmul.f32 1.0, %v531
          %v533 = vrcp.pop %v513
          %v534 = vmul.f32 1.0, %v533
          %v535 = vrcp.pop %v514
          %v536 = vmul.f32 1.0, %v535
          %v537 = vrcp.pop %v515
          %v538 = vmul.f32 1.0, %v537
          %v539 = vrcp.pop %v516
          %v540 = vmul.f32 1.0, %v539
          %v541 = vsel %vm517, %v526, 0.0
          %v542 = vsel %vm518, %v528, 0.0
          %v543 = vsel %vm519, %v530, 0.0
          %v544 = vsel %vm520, %v532, 0.0
          %v545 = vsel %vm521, %v534, 0.0
          %v546 = vsel %vm522, %v536, 0.0
          %v547 = vsel %vm523, %v538, 0.0
          %v548 = vsel %vm524, %v540, 0.0
          %550 = vset.pattern.permute.xlu0 0
          %551 = vperm.xlu0 %550, %v541
          %v552 = vpop.permute.xlu0 %551
          %555 = vset.pattern.permute.xlu0 0
          %556 = vperm.xlu0 %555, %v542
          %v557 = vpop.permute.xlu0 %556
          %560 = vset.pattern.permute.xlu0 0
          %561 = vperm.xlu0 %560, %v543
          %v562 = vpop.permute.xlu0 %561
          %565 = vset.pattern.permute.xlu0 0
          %566 = vperm.xlu0 %565, %v544
          %v567 = vpop.permute.xlu0 %566
          %570 = vset.pattern.permute.xlu0 0
          %571 = vperm.xlu0 %570, %v545
          %v572 = vpop.permute.xlu0 %571
          %575 = vset.pattern.permute.xlu0 0
          %576 = vperm.xlu0 %575, %v546
          %v577 = vpop.permute.xlu0 %576
          %580 = vset.pattern.permute.xlu0 0
          %581 = vperm.xlu0 %580, %v547
          %v582 = vpop.permute.xlu0 %581
          %585 = vset.pattern.permute.xlu0 0
          %586 = vperm.xlu0 %585, %v548
          %v587 = vpop.permute.xlu0 %586
          %v589 = vmul.f32 %v501, %v552
          %v590 = vmul.f32 %v502, %v557
          %v591 = vmul.f32 %v503, %v562
          %v592 = vmul.f32 %v504, %v567
          %v593 = vmul.f32 %v505, %v572
          %v594 = vmul.f32 %v506, %v577
          %v595 = vmul.f32 %v507, %v582
          %v596 = vmul.f32 %v508, %v587
          %597 = vst [vmem:[%s280] sm:$0xff] %v589
          %598 = vst [vmem:[%s280 + $0x8] sm:$0xff] %v590
          %599 = vst [vmem:[%s280 + $0x10] sm:$0xff] %v591
          %600 = vst [vmem:[%s280 + $0x18] sm:$0xff] %v592
          %601 = vst [vmem:[%s280 + $0x20] sm:$0xff] %v593
          %602 = vst [vmem:[%s280 + $0x28] sm:$0xff] %v594
          %603 = vst [vmem:[%s280 + $0x30] sm:$0xff] %v595
          %604 = vst [vmem:[%s280 + $0x38] sm:$0xff] %v596
        $region74: #{message_agg.1} parent=61 // pred_fallthru
          _
        %s605 = smul.u32 8, %s19
        %p606 = scmp.lt.s32.totalorder %s18, 1
        %s607 = scalar_select %p606, %s18, 1
        %p608 = scmp.lt.s32.totalorder %s605, 15
        %s609 = scalar_select %p608, %s605, 15
        %s610 = smul.addr %s607, 16
        %s611 = sadd.s32 %s609, %s610
        %s612 = smul.addr %s611, 8
        %s613 = scalar_lea.vmem %s2, %s612
        // Predicated region
        $region75: #{message_agg.1} parent=61 // pred_check
          %p614 = pneg %p110
        $region76: #{message_agg.1} parent=61 // pred_check_branch
          %616 = sbr.rel (%p614) target = $region78
        $region77: #{message_agg.1} parent=61 // pred_region
          %s617 = smul.u32 8, %s19
        $region78: #{message_agg.1} parent=61 // pred_fallthru
          _
      $region62: #{message_agg.1} parent=5 // pred_fallthru
        _
      %p618 = scmp.le.s32.totalorder 2, %s8
      // Predicated region
      $region79: #{message_agg.1} parent=5 // pred_check
        %p619 = pneg %p618
      $region80: #{message_agg.1} parent=5 // pred_check_branch
        %621 = sbr.rel (%p619) target = $region82
      $region81: #{message_agg.1} parent=5 // pred_region
        %s622 = ssub.s32 %s8, 2
        // Predicated region
        $region83: #{message_agg.1} parent=81 // pred_check
          %p623 = pneg %p116
        $region84: #{message_agg.1} parent=81 // pred_check_branch
          %625 = sbr.rel (%p623) target = $region86
        $region85: #{message_agg.1} parent=81 // pred_region
          %s626 = smul.u32 8, %s22
          %p627 = scmp.lt.s32.totalorder %s21, 1
          %s628 = scalar_select %p627, %s21, 1
          %p629 = scmp.lt.s32.totalorder %s626, 15
          %s630 = scalar_select %p629, %s626, 15
          %s631 = smul.addr %s628, 16
          %s632 = sadd.s32 %s630, %s631
          %s633 = smul.addr %s632, 8
          %s634 = scalar_lea.vmem %s2, %s633
        $region86: #{message_agg.1} parent=81 // pred_fallthru
          _
      $region82: #{message_agg.1} parent=5 // pred_fallthru
        _
    $region6: #{message_agg.1} parent=1 // loop_footer
      %s12 = sadd.s32 1, %s8
    $region7: #{message_agg.1} parent=1 // loop_footer_branch
      %7 = sbr.rel target = $region3
    $region8: #{message_agg.1} parent=1 // loop_exit
      _

</llo_original>
